<compile_context>
chip_gen: v5e
topology: v5e:2x2
jax: 0.10.0
libtpu: 0.0.40
codegen_flags: <defaults>
</compile_context>

<pallas_src>
import functools
import math

import jax
import jax.numpy as jnp
from jax.experimental import pallas as pl
from jax.experimental.pallas import tpu as pltpu


def _focal_kernel(logits_ref, labels_ref, out_ref, *,
                  gamma, ignore_index, hw, pix_per_block, need_pix_mask):
    """One grid block = `pix_per_block` pixels laid out as (P0, P1) lane-dense planes.

    logits_ref: (C, P0, P1)   labels_ref: (P0, P1)   out_ref: (1, P1) f32 partial sums.
    """
    t = pl.program_id(1)
    C, P0, P1 = logits_ref.shape

    lab = labels_ref[...].astype(jnp.int32)                       # (P0, P1)

    valid = lab != ignore_index
    if need_pix_mask:  # static: only emitted when a ragged tail block exists
        s_io = jax.lax.broadcasted_iota(jnp.int32, (P0, P1), 0)
        l_io = jax.lax.broadcasted_iota(jnp.int32, (P0, P1), 1)
        pix = t * pix_per_block + s_io * P1 + l_io                # flat pixel index
        valid = jnp.logical_and(valid, pix < hw)

    # Pass 1: running max over class planes (per-plane upcast, no full-block f32 copy).
    m = logits_ref[0].astype(jnp.float32)
    for c in range(1, C):
        m = jnp.maximum(m, logits_ref[c].astype(jnp.float32))

    # Pass 2: exp-sum and label-class logit, fused (no one-hot iota / third traversal).
    sum_e = jnp.zeros((P0, P1), jnp.float32)
    picked = jnp.zeros((P0, P1), jnp.float32)
    for c in range(C):
        xc = logits_ref[c].astype(jnp.float32)
        sum_e = sum_e + jnp.exp(xc - m)
        picked = jnp.where(lab == c, xc, picked)

    # Select (not multiply) so garbage in ragged-tail lanes cannot propagate NaN/Inf.
    logpt = jnp.where(valid, jnp.log(sum_e) + m - picked, 0.0)    # CE; 0 on ignored pixels
    pt = jnp.exp(-logpt)
    base = jnp.maximum(1.0 - pt, 0.0)                             # clamp fp noise
    loss = (base ** gamma) * logpt                                # int gamma -> integer_pow

    # Per-lane partial sums; the tiny final reduction happens in plain JAX.
    out_ref[...] = jnp.sum(loss, axis=0, keepdims=True)


def _vmem_capacity_bytes():
    try:
        return int(pltpu.get_tpu_info().vmem_capacity_bytes)
    except Exception:
        return 64 * 1024 * 1024  # conservative default (v7x-sized)


def _round_up(x, m):
    return ((x + m - 1) // m) * m


def focal_loss(logits_nchw, labels_nhw, *, gamma=2, ignore_index=255, size_average=True):
    """Pallas FocalLoss forward.  logits: (N,C,H,W) f32/bf16, labels: (N,H,W) int."""
    N, C, H, W = logits_nchw.shape
    HW = H * W

    # Smallest label dtype that holds class ids and ignore_index (HBM traffic, v5e/v6e).
    if -(2 ** 15) <= ignore_index < 2 ** 15 and C <= 2 ** 15:
        lab_dtype = jnp.int16
    else:
        lab_dtype = jnp.int32
    in_itemsize = jnp.dtype(logits_nchw.dtype).itemsize
    lab_itemsize = jnp.dtype(lab_dtype).itemsize

    # Generation-aware VMEM budget (v5e/v6e: 128 MiB physical, v7x: 64 MiB).
    vmem_cap = _vmem_capacity_bytes()
    vmem_limit = 64 * 1024 * 1024 if vmem_cap >= 96 * 1024 * 1024 else 40 * 1024 * 1024
    # Double-buffered inputs + ~12 f32-equivalent intermediate planes per pixel.
    bytes_per_pixel = 2 * (C * in_itemsize + lab_itemsize) + 12 * 4
    max_pixels = max(1024, (vmem_limit // 2) // bytes_per_pixel)

    SUB = 16         # sublane-block multiple: safe for f32/bf16 logits and int16 labels
    MIN_BLOCKS = 8   # keep both v7x TensorCores fed and the DMA pipeline busy

    if HW % 128 == 0:
        # Dense path: pixels as (S, 128) planes -> full vreg occupancy for per-pixel math.
        S_tot = HW // 128
        s_blk = max(SUB, min(512, (max_pixels // 128) // SUB * SUB))
        if N * math.ceil(S_tot / s_blk) < MIN_BLOCKS and S_tot > SUB:
            want_t = min(math.ceil(MIN_BLOCKS / N), math.ceil(S_tot / SUB))
            s_blk = _round_up(math.ceil(S_tot / want_t), SUB)
        if s_blk >= S_tot:
            s_blk = S_tot                                   # full extent: any size allowed
        T = math.ceil(S_tot / s_blk)
        pix_per_block = s_blk * 128
        need_mask = (S_tot % s_blk) != 0

        x = logits_nchw.reshape(N, C, S_tot, 128)           # free reshape: no transpose/pad
        lab = labels_nhw.reshape(N, S_tot, 128).astype(lab_dtype)
        in_specs = [
            pl.BlockSpec((None, C, s_blk, 128), lambda n, t: (n, 0, t, 0)),
            pl.BlockSpec((None, s_blk, 128), lambda n, t: (n, t, 0)),
        ]
        out_lanes = 128
    else:
        # Ragged fallback: pixels on a single (1, TILE) lane row, tail masked in-kernel.
        tile = max(128, min((max_pixels // 128) * 128, _round_up(HW, 128)))
        if N * math.ceil(HW / tile) < MIN_BLOCKS and HW > 128:
            want_t = min(math.ceil(MIN_BLOCKS / N), math.ceil(HW / 128))
            tile = _round_up(math.ceil(HW / want_t), 128)
        if tile >= HW:
            tile = HW                                       # full extent: any size allowed
        T = math.ceil(HW / tile)
        pix_per_block = tile
        need_mask = (HW % tile) != 0

        x = logits_nchw.reshape(N, C, 1, HW)
        lab = labels_nhw.reshape(N, 1, HW).astype(lab_dtype)
        in_specs = [
            pl.BlockSpec((None, C, 1, tile), lambda n, t: (n, 0, 0, t)),
            pl.BlockSpec((None, 1, tile), lambda n, t: (n, 0, t)),
        ]
        out_lanes = tile

    kernel = functools.partial(_focal_kernel, gamma=gamma, ignore_index=ignore_index,
                               hw=HW, pix_per_block=pix_per_block, need_pix_mask=need_mask)

    cost = pl.CostEstimate(
        flops=int(N * HW * (6 * C + 12)),
        transcendentals=int(N * HW * (C + 2)),
        bytes_accessed=int(x.size * in_itemsize + lab.size * lab_itemsize
                           + N * T * out_lanes * 4),
    )

    partials = pl.pallas_call(
        kernel,
        out_shape=jax.ShapeDtypeStruct((N, T, 1, out_lanes), jnp.float32),
        grid_spec=pltpu.PrefetchScalarGridSpec(
            num_scalar_prefetch=0,
            grid=(N, T),
            in_specs=in_specs,
            out_specs=pl.BlockSpec((None, None, 1, out_lanes), lambda n, t: (n, t, 0, 0)),
        ),
        compiler_params=pltpu.CompilerParams(
            dimension_semantics=("parallel", "parallel"),
            vmem_limit_bytes=vmem_limit,
        ),
        cost_estimate=cost,
    )(x, lab)

    loss_sum = jnp.sum(partials)
    if size_average:
        # nn.CrossEntropyLoss(reduce=False) zeros ignored pixels; .mean() divides by N*H*W.
        return loss_sum / jnp.float32(N * HW)
    return loss_sum


def _focal_loss_ref(logits_nchw, labels_nhw, gamma=2, ignore_index=255, size_average=True):
    """Plain-JAX reference mirroring the PyTorch module."""
    N, C, H, W = logits_nchw.shape
    x = jnp.transpose(logits_nchw, (0, 2, 3, 1)).reshape(-1, C).astype(jnp.float32)
    lab = labels_nhw.reshape(-1)
    logz = jax.nn.logsumexp(x, axis=-1)
    picked = jnp.take_along_axis(x, jnp.clip(lab, 0, C - 1)[:, None], axis=-1)[:, 0]
    logpt = jnp.where(lab == ignore_index, 0.0, logz - picked)
    pt = jnp.exp(-logpt)
    loss = (1.0 - pt) ** gamma * logpt
    return loss.mean() if size_average else loss.sum()


if __name__ == "__main__":
    key = jax.random.PRNGKey(0)
    k1, k2, k3 = jax.random.split(key, 3)

    # Primary check: N=2, C=4, H=W=16 (HW % 128 == 0 -> dense path), ~10% ignored pixels.
    N, C, H, W = 2, 4, 16, 16
    logits = jax.random.normal(k1, (N, C, H, W), dtype=jnp.float32)
    labels = jax.random.randint(k2, (N, H, W), 0, C, dtype=jnp.int32)
    ignore_mask = jax.random.uniform(k3, (N, H, W)) < 0.1
    labels = jnp.where(ignore_mask, 255, labels)

    out = jax.block_until_ready(
        focal_loss(logits, labels, gamma=2, ignore_index=255, size_average=True))
    ref = _focal_loss_ref(logits, labels)
    assert jnp.allclose(out, ref, rtol=1e-4, atol=1e-5), (out, ref)

    # Ragged spatial size (HW not a multiple of 128) exercises the fallback layout + mask.
    k4, k5 = jax.random.split(k3)
    N2, C2, H2, W2 = 1, 3, 10, 13
    logits2 = jax.random.normal(k4, (N2, C2, H2, W2), dtype=jnp.float32)
    labels2 = jax.random.randint(k5, (N2, H2, W2), 0, C2, dtype=jnp.int32)
    labels2 = labels2.at[0, 0, 0].set(255)
    out2 = jax.block_until_ready(focal_loss(logits2, labels2, size_average=False))
    ref2 = _focal_loss_ref(logits2, labels2, size_average=False)
    assert jnp.allclose(out2, ref2, rtol=1e-4, atol=1e-5), (out2, ref2)

    # Dense path with a ragged sublane tail (multiple blocks, in-kernel pixel mask).
    k6, k7 = jax.random.split(k5)
    N3, C3, H3, W3 = 1, 5, 40, 64
    logits3 = jax.random.normal(k6, (N3, C3, H3, W3), dtype=jnp.float32)
    labels3 = jax.random.randint(k7, (N3, H3, W3), 0, C3, dtype=jnp.int32)
    labels3 = jnp.where(jax.random.uniform(k6, (N3, H3, W3)) < 0.05, 255, labels3)
    out3 = jax.block_until_ready(focal_loss(logits3, labels3))
    ref3 = _focal_loss_ref(logits3, labels3)
    assert jnp.allclose(out3, ref3, rtol=1e-4, atol=1e-5), (out3, ref3)

    # bf16 logits consumed directly (per-class-plane upcast in kernel); compute stays f32.
    out4 = jax.block_until_ready(focal_loss(logits.astype(jnp.bfloat16), labels))
    ref4 = _focal_loss_ref(logits.astype(jnp.bfloat16), labels)
    assert jnp.allclose(out4, ref4, rtol=1e-3, atol=1e-4), (out4, ref4)

    print("KERNEL_OK")
</pallas_src>

<mosaic_0001>
module attributes {stable_mosaic.version = 11 : i64} {
  func.func @_focal_kernel(%arg0: i32, %arg1: i32, %arg2: memref<1x4x2x128xf32, #tpu.memory_space<vmem>>, %arg3: memref<1x2x128xi16, #tpu.memory_space<vmem>>, %arg4: memref<1x1x1x128xf32, #tpu.memory_space<vmem>>) attributes {dimension_semantics = [#tpu.dimension_semantics<parallel>, #tpu.dimension_semantics<parallel>], iteration_bounds = array<i64: 2, 1>, scalar_prefetch = 0 : i64, scratch_operands = 0 : i64, tpu.core_type = #tpu.core_type<tc>, window_params = [{transform_indices = @transform_0, window_bounds = array<i64: 1, 4, 2, 128>}, {transform_indices = @transform_1, window_bounds = array<i64: 1, 2, 128>}, {transform_indices = @transform_2, window_bounds = array<i64: 1, 1, 1, 128>}]} {
    %c0 = arith.constant 0 : index
    %c0_0 = arith.constant 0 : index
    %c0_1 = arith.constant 0 : index
    %0 = vector.load %arg3[%c0, %c0_0, %c0_1] : memref<1x2x128xi16, #tpu.memory_space<vmem>>, vector<1x2x128xi16>
    %1 = vector.shape_cast %0 : vector<1x2x128xi16> to vector<2x128xi16>
    %2 = arith.extsi %1 : vector<2x128xi16> to vector<2x128xi32>
    %c255_i32 = arith.constant 255 : i32
    %3 = vector.broadcast %c255_i32 : i32 to vector<2x128xi32>
    %4 = arith.cmpi ne, %2, %3 : vector<2x128xi32>
    %c0_2 = arith.constant 0 : index
    %c0_3 = arith.constant 0 : index
    %c0_4 = arith.constant 0 : index
    %c0_5 = arith.constant 0 : index
    %5 = vector.load %arg2[%c0_2, %c0_3, %c0_4, %c0_5] : memref<1x4x2x128xf32, #tpu.memory_space<vmem>>, vector<1x1x2x128xf32>
    %6 = vector.shape_cast %5 : vector<1x1x2x128xf32> to vector<2x128xf32>
    %c0_6 = arith.constant 0 : index
    %c1 = arith.constant 1 : index
    %c0_7 = arith.constant 0 : index
    %c0_8 = arith.constant 0 : index
    %7 = vector.load %arg2[%c0_6, %c1, %c0_7, %c0_8] : memref<1x4x2x128xf32, #tpu.memory_space<vmem>>, vector<1x1x2x128xf32>
    %8 = vector.shape_cast %7 : vector<1x1x2x128xf32> to vector<2x128xf32>
    %9 = arith.maximumf %6, %8 : vector<2x128xf32>
    %c0_9 = arith.constant 0 : index
    %c2 = arith.constant 2 : index
    %c0_10 = arith.constant 0 : index
    %c0_11 = arith.constant 0 : index
    %10 = vector.load %arg2[%c0_9, %c2, %c0_10, %c0_11] : memref<1x4x2x128xf32, #tpu.memory_space<vmem>>, vector<1x1x2x128xf32>
    %11 = vector.shape_cast %10 : vector<1x1x2x128xf32> to vector<2x128xf32>
    %12 = arith.maximumf %9, %11 : vector<2x128xf32>
    %c0_12 = arith.constant 0 : index
    %c3 = arith.constant 3 : index
    %c0_13 = arith.constant 0 : index
    %c0_14 = arith.constant 0 : index
    %13 = vector.load %arg2[%c0_12, %c3, %c0_13, %c0_14] : memref<1x4x2x128xf32, #tpu.memory_space<vmem>>, vector<1x1x2x128xf32>
    %14 = vector.shape_cast %13 : vector<1x1x2x128xf32> to vector<2x128xf32>
    %15 = arith.maximumf %12, %14 : vector<2x128xf32>
    %cst = arith.constant 0.000000e+00 : f32
    %16 = vector.broadcast %cst : f32 to vector<2x128xf32>
    %cst_15 = arith.constant 0.000000e+00 : f32
    %17 = vector.broadcast %cst_15 : f32 to vector<2x128xf32>
    %c0_16 = arith.constant 0 : index
    %c0_17 = arith.constant 0 : index
    %c0_18 = arith.constant 0 : index
    %c0_19 = arith.constant 0 : index
    %18 = vector.load %arg2[%c0_16, %c0_17, %c0_18, %c0_19] : memref<1x4x2x128xf32, #tpu.memory_space<vmem>>, vector<1x1x2x128xf32>
    %19 = vector.shape_cast %18 : vector<1x1x2x128xf32> to vector<2x128xf32>
    %20 = arith.subf %19, %15 : vector<2x128xf32>
    %21 = math.exp %20 : vector<2x128xf32>
    %22 = arith.addf %16, %21 : vector<2x128xf32>
    %c0_i32 = arith.constant 0 : i32
    %23 = vector.broadcast %c0_i32 : i32 to vector<2x128xi32>
    %24 = arith.cmpi eq, %2, %23 : vector<2x128xi32>
    %25 = arith.select %24, %19, %17 : vector<2x128xi1>, vector<2x128xf32>
    %c0_20 = arith.constant 0 : index
    %c1_21 = arith.constant 1 : index
    %c0_22 = arith.constant 0 : index
    %c0_23 = arith.constant 0 : index
    %26 = vector.load %arg2[%c0_20, %c1_21, %c0_22, %c0_23] : memref<1x4x2x128xf32, #tpu.memory_space<vmem>>, vector<1x1x2x128xf32>
    %27 = vector.shape_cast %26 : vector<1x1x2x128xf32> to vector<2x128xf32>
    %28 = arith.subf %27, %15 : vector<2x128xf32>
    %29 = math.exp %28 : vector<2x128xf32>
    %30 = arith.addf %22, %29 : vector<2x128xf32>
    %c1_i32 = arith.constant 1 : i32
    %31 = vector.broadcast %c1_i32 : i32 to vector<2x128xi32>
    %32 = arith.cmpi eq, %2, %31 : vector<2x128xi32>
    %33 = arith.select %32, %27, %25 : vector<2x128xi1>, vector<2x128xf32>
    %c0_24 = arith.constant 0 : index
    %c2_25 = arith.constant 2 : index
    %c0_26 = arith.constant 0 : index
    %c0_27 = arith.constant 0 : index
    %34 = vector.load %arg2[%c0_24, %c2_25, %c0_26, %c0_27] : memref<1x4x2x128xf32, #tpu.memory_space<vmem>>, vector<1x1x2x128xf32>
    %35 = vector.shape_cast %34 : vector<1x1x2x128xf32> to vector<2x128xf32>
    %36 = arith.subf %35, %15 : vector<2x128xf32>
    %37 = math.exp %36 : vector<2x128xf32>
    %38 = arith.addf %30, %37 : vector<2x128xf32>
    %c2_i32 = arith.constant 2 : i32
    %39 = vector.broadcast %c2_i32 : i32 to vector<2x128xi32>
    %40 = arith.cmpi eq, %2, %39 : vector<2x128xi32>
    %41 = arith.select %40, %35, %33 : vector<2x128xi1>, vector<2x128xf32>
    %c0_28 = arith.constant 0 : index
    %c3_29 = arith.constant 3 : index
    %c0_30 = arith.constant 0 : index
    %c0_31 = arith.constant 0 : index
    %42 = vector.load %arg2[%c0_28, %c3_29, %c0_30, %c0_31] : memref<1x4x2x128xf32, #tpu.memory_space<vmem>>, vector<1x1x2x128xf32>
    %43 = vector.shape_cast %42 : vector<1x1x2x128xf32> to vector<2x128xf32>
    %44 = arith.subf %43, %15 : vector<2x128xf32>
    %45 = math.exp %44 : vector<2x128xf32>
    %46 = arith.addf %38, %45 : vector<2x128xf32>
    %c3_i32 = arith.constant 3 : i32
    %47 = vector.broadcast %c3_i32 : i32 to vector<2x128xi32>
    %48 = arith.cmpi eq, %2, %47 : vector<2x128xi32>
    %49 = arith.select %48, %43, %41 : vector<2x128xi1>, vector<2x128xf32>
    %50 = math.log %46 : vector<2x128xf32>
    %51 = arith.addf %50, %15 : vector<2x128xf32>
    %52 = arith.subf %51, %49 : vector<2x128xf32>
    %cst_32 = arith.constant 0.000000e+00 : f32
    %53 = vector.broadcast %cst_32 : f32 to vector<2x128xf32>
    %54 = arith.select %4, %52, %53 : vector<2x128xi1>, vector<2x128xf32>
    %cst_33 = arith.constant 0.000000e+00 : f32
    %55 = vector.broadcast %cst_33 : f32 to vector<2x128xf32>
    %56 = arith.subf %55, %54 : vector<2x128xf32>
    %57 = math.exp %56 : vector<2x128xf32>
    %cst_34 = arith.constant 1.000000e+00 : f32
    %58 = vector.broadcast %cst_34 : f32 to vector<2x128xf32>
    %59 = arith.subf %58, %57 : vector<2x128xf32>
    %cst_35 = arith.constant 0.000000e+00 : f32
    %60 = vector.broadcast %cst_35 : f32 to vector<2x128xf32>
    %61 = arith.maximumf %59, %60 : vector<2x128xf32>
    %62 = arith.mulf %61, %61 : vector<2x128xf32>
    %63 = arith.mulf %62, %54 : vector<2x128xf32>
    %cst_36 = arith.constant dense<0.000000e+00> : vector<128xf32>
    %64 = vector.multi_reduction <add>, %63, %cst_36 [0] : vector<2x128xf32> to vector<128xf32>
    %65 = vector.shape_cast %64 : vector<128xf32> to vector<1x128xf32>
    %c0_37 = arith.constant 0 : index
    %c0_38 = arith.constant 0 : index
    %c0_39 = arith.constant 0 : index
    %c0_40 = arith.constant 0 : index
    %66 = vector.load %arg4[%c0_37, %c0_38, %c0_39, %c0_40] : memref<1x1x1x128xf32, #tpu.memory_space<vmem>>, vector<1x1x1x128xf32>
    %67 = vector.shape_cast %66 : vector<1x1x1x128xf32> to vector<1x128xf32>
    %68 = vector.shape_cast %65 : vector<1x128xf32> to vector<1x1x1x128xf32>
    tpu.vector_store %arg4[%c0_37, %c0_38, %c0_39, %c0_40], %68 {strides = array<i32>} : memref<1x1x1x128xf32, #tpu.memory_space<vmem>>, vector<1x1x1x128xf32>,
    return
  }
  func.func @transform_0(%arg0: i32, %arg1: i32) -> (i32, i32, i32, i32) {
    %c0_i32 = arith.constant 0 : i32
    %c0_i32_0 = arith.constant 0 : i32
    %c0_i32_1 = arith.constant 0 : i32
    return %arg0, %c0_i32, %arg1, %c0_i32_0 : i32, i32, i32, i32
  }
  func.func @transform_1(%arg0: i32, %arg1: i32) -> (i32, i32, i32) {
    %c0_i32 = arith.constant 0 : i32
    %c0_i32_0 = arith.constant 0 : i32
    return %arg0, %arg1, %c0_i32 : i32, i32, i32
  }
  func.func @transform_2(%arg0: i32, %arg1: i32) -> (i32, i32, i32, i32) {
    %c0_i32 = arith.constant 0 : i32
    %c0_i32_0 = arith.constant 0 : i32
    %c0_i32_1 = arith.constant 0 : i32
    return %arg0, %arg1, %c0_i32, %c0_i32_0 : i32, i32, i32, i32
  }
}

</mosaic_0001>

<llo_original>
// kernel: tpu_custom_call.1
$region0: #{tpu_custom_call.1}
  #allocation0 [shape = 'u32[]', space=smem, size = 0x4, offset = 0x4, fixed_abs, tag = 'smem constant byte address 0x4 - core index']
  #allocation1 [shape = 'u32[72,128]{1,0:T(1,128)}', space=vmem, size = 0x9000, scoped, tag = 'internal scratch']
  %s0 = inlined_call_operand.hbm [shape: f32[2,4,2,128], index: 0, kind: input, shape index: {}]
  %s1 = inlined_call_operand.hbm [shape: s16[2,2,128], index: 1, kind: input, shape index: {}]
  %s2 = inlined_call_operand.hbm [shape: f32[2,1,1,128], index: 2, kind: output, shape index: {}]
  %s3 = sld [smem:[#allocation0]]
  $region49: #{tpu_custom_call.1} parent=0
    _
  %s5 = ssub.s32 1, %s3
  %s6 = scalar_select 0, %s5, %s3
  $region1: #{tpu_custom_call.1} parent=0
    #allocation2 [shape = 'u8[8192]{0}', space=vmem, size = 0x2000, scoped, tag = 'input window, operand 0']
    #allocation3 [shape = 's32[2]{0}', space=sflag, size = 0x8, scoped, tag = 'scoped memory for tpu_custom_call.1']
    #allocation4 [shape = 's32[2]{0}', space=sflag, size = 0x8, scoped, tag = 'scoped memory for tpu_custom_call.1']
    #allocation5 [shape = 'u8[1024]{0}', space=vmem, size = 0x400, scoped, tag = 'input window, operand 1']
    #allocation6 [shape = 's32[2]{0}', space=sflag, size = 0x8, scoped, tag = 'scoped memory for tpu_custom_call.1']
    #allocation7 [shape = 'u8[1024]{0}', space=vmem, size = 0x400, scoped, tag = 'output window, operand 0']
    %7 = vsyncpa [#allocation3], 0
    %s8 = scalar_lea.sflag [#allocation3], 1
    %9 = vsyncpa %s8, 0
    %10 = vsyncpa [#allocation6], 0
    %s11 = scalar_lea.sflag [#allocation6], 1
    %12 = vsyncpa %s11, 0
    %13 = vsyncpa [#allocation4], 0
    %s14 = scalar_lea.sflag [#allocation4], 1
    %15 = vsyncpa %s14, 0
    loop: start=0, step=1, limit=4
    $region2: #{tpu_custom_call.1} parent=1 // loop_pre_header
      _
    $region3: #{tpu_custom_call.1} parent=1 // loop_header
      %s17 = sphi 0, %s21
      %p18 = scmp.ge.s32.totalorder %s17, 4
      %s24 = sphi 0, %s36
      %s25 = sphi 0, %s32
      %s26 = sphi 0, %s24
      %s27 = sphi 0, %s25
      %s28 = sphi 0, %s26
      %s29 = sphi 0, %s27
      %s41 = sphi 0, %s43
      %s44 = sphi 0, %s41
      %s45 = sphi 0, %s44
      %s61 = sphi 0, %s45
      %s69 = sphi 0, %s71
      %s72 = sphi 0, %s69
      %s73 = sphi 0, %s72
      %s89 = sphi 0, %s73
      %s97 = sphi 0, %s99
      %s100 = sphi 0, %s97
      %s101 = sphi 0, %s100
      %s117 = sphi 0, %s101
    $region4: #{tpu_custom_call.1} parent=1 // loop_header_branch
      %20 = sbr.rel (%p18) target = $region8
    $region5: #{tpu_custom_call.1} parent=1 // loop_body
      %s22 = ssub.s32 %s17, 1
      %s23 = ssub.s32 %s17, 2
      %s30 = sadd.s32 1, %s25
      %p31 = scmp.ge.s32.totalorder %s30, 1
      %s32 = scalar_select %p31, 0, %s30
      %s33 = sadd.s32 1, %s24
      %s34 = scalar_select %p31, %s33, %s24
      %p35 = scmp.ge.s32.totalorder %s34, 2
      %s36 = scalar_select %p35, 0, %s34
      %s37 = ssub.s32 %s24, %s36
      %s38 = ssub.s32 %s25, %s32
      %s39 = sor.u32 %s37, %s38
      %p40 = scmp.eq.s32.totalorder %s39, 0
      %s42 = sadd.s32 %s41, 1
      %s43 = scalar_select %p40, %s41, %s42
      %p46 = pneg %p40
      %p47 = scmp.eq.s32.totalorder %s17, 1
      %p48 = por %p46, %p47
      %p49 = scmp.ne.s32.totalorder %s41, %s44
      %p50 = scmp.eq.s32.totalorder %s17, 0
      %p51 = por %p49, %p50
      %p52 = scmp.ne.s32.totalorder %s41, %s44
      %p53 = scmp.eq.s32.totalorder %s22, 1
      %p54 = por %p52, %p53
      %p55 = scmp.ne.s32.totalorder %s44, %s45
      %p56 = scmp.eq.s32.totalorder %s22, 0
      %p57 = por %p55, %p56
      %p58 = scmp.ne.s32.totalorder %s44, %s45
      %p59 = scmp.eq.s32.totalorder %s23, 1
      %p60 = por %p58, %p59
      %p62 = scmp.ne.s32.totalorder %s45, %s61
      %p63 = scmp.eq.s32.totalorder %s23, 0
      %p64 = por %p62, %p63
      %s65 = ssub.s32 %s24, %s36
      %s66 = ssub.s32 %s25, %s32
      %s67 = sor.u32 %s65, %s66
      %p68 = scmp.eq.s32.totalorder %s67, 0
      %s70 = sadd.s32 %s69, 1
      %s71 = scalar_select %p68, %s69, %s70
      %p74 = pneg %p68
      %p75 = scmp.eq.s32.totalorder %s17, 1
      %p76 = por %p74, %p75
      %p77 = scmp.ne.s32.totalorder %s69, %s72
      %p78 = scmp.eq.s32.totalorder %s17, 0
      %p79 = por %p77, %p78
      %p80 = scmp.ne.s32.totalorder %s69, %s72
      %p81 = scmp.eq.s32.totalorder %s22, 1
      %p82 = por %p80, %p81
      %p83 = scmp.ne.s32.totalorder %s72, %s73
      %p84 = scmp.eq.s32.totalorder %s22, 0
      %p85 = por %p83, %p84
      %p86 = scmp.ne.s32.totalorder %s72, %s73
      %p87 = scmp.eq.s32.totalorder %s23, 1
      %p88 = por %p86, %p87
      %p90 = scmp.ne.s32.totalorder %s73, %s89
      %p91 = scmp.eq.s32.totalorder %s23, 0
      %p92 = por %p90, %p91
      %s93 = ssub.s32 %s24, %s36
      %s94 = ssub.s32 %s25, %s32
      %s95 = sor.u32 %s93, %s94
      %p96 = scmp.eq.s32.totalorder %s95, 0
      %s98 = sadd.s32 %s97, 1
      %s99 = scalar_select %p96, %s97, %s98
      %p102 = pneg %p96
      %p103 = scmp.eq.s32.totalorder %s17, 1
      %p104 = por %p102, %p103
      %p105 = scmp.ne.s32.totalorder %s97, %s100
      %p106 = scmp.eq.s32.totalorder %s17, 0
      %p107 = por %p105, %p106
      %p108 = scmp.ne.s32.totalorder %s97, %s100
      %p109 = scmp.eq.s32.totalorder %s22, 1
      %p110 = por %p108, %p109
      %p111 = scmp.ne.s32.totalorder %s100, %s101
      %p112 = scmp.eq.s32.totalorder %s22, 0
      %p113 = por %p111, %p112
      %p114 = scmp.ne.s32.totalorder %s100, %s101
      %p115 = scmp.eq.s32.totalorder %s23, 1
      %p116 = por %p114, %p115
      %p118 = scmp.ne.s32.totalorder %s101, %s117
      %p119 = scmp.eq.s32.totalorder %s23, 0
      %p120 = por %p118, %p119
      %p121 = scmp.le.s32.totalorder 1, %s17
      %p122 = scmp.lt.s32.totalorder %s17, 3
      %p123 = pnand %p121, %p122
      %p124 = pneg %p123
      // Predicated region
      $region9: #{tpu_custom_call.1} parent=5 // pred_check
        _
      $region10: #{tpu_custom_call.1} parent=5 // pred_check_branch
        %126 = sbr.rel (%p123) target = $region12
      $region11: #{tpu_custom_call.1} parent=5 // pred_region
        %s127 = ssub.s32 %s17, 1
      $region12: #{tpu_custom_call.1} parent=5 // pred_fallthru
        _
      %p128 = scmp.lt.s32.totalorder %s17, 2
      // Predicated region
      $region13: #{tpu_custom_call.1} parent=5 // pred_check
        %p129 = pneg %p128
      $region14: #{tpu_custom_call.1} parent=5 // pred_check_branch
        %131 = sbr.rel (%p129) target = $region16
      $region15: #{tpu_custom_call.1} parent=5 // pred_region
        // Predicated region
        $region17: #{tpu_custom_call.1} parent=15 // pred_check
          %p132 = pneg %p51
        $region18: #{tpu_custom_call.1} parent=15 // pred_check_branch
          %134 = sbr.rel (%p132) target = $region20
        $region19: #{tpu_custom_call.1} parent=15 // pred_region
          %s135 = sand.u32 %s41, 1
          %s136 = scalar_lea.sflag [#allocation3], %s135
          %s137 = sand.u32 %s41, 1
          %s138 = smul.addr %s137, 8
          %s139 = scalar_lea.vmem [#allocation2], %s138
          %141 = vsyncadd %s136, 0
          %s142 = smul.addr %s24, 4
          %s143 = sadd.s32 %s25, %s142
          %s144 = smul.addr %s143, 2
          %s145 = scalar_lea.hbm %s0, %s144
          %s146 = sshll.u32 %s145, 4
          %s147 = int_to_ptr.hbm [resolvable:$true] %s146
          %s148 = sshll.u32 %s139, 4
          %s149 = int_to_ptr.vmem [resolvable:$true] %s148
          %154 = dma.hbm_to_vmem [thread:$0]  %s147, 128, %s149, %s136, 32, 32, 2
        $region20: #{tpu_custom_call.1} parent=15 // pred_fallthru
          _
        // Predicated region
        $region21: #{tpu_custom_call.1} parent=15 // pred_check
          %p155 = pneg %p79
        $region22: #{tpu_custom_call.1} parent=15 // pred_check_branch
          %157 = sbr.rel (%p155) target = $region24
        $region23: #{tpu_custom_call.1} parent=15 // pred_region
          %s158 = sand.u32 %s69, 1
          %s159 = scalar_lea.sflag [#allocation6], %s158
          %s160 = sand.u32 %s69, 1
          %s161 = scalar_lea.vmem [#allocation5], %s160
          %163 = vsyncadd %s159, 0
          %s164 = sadd.s32 %s25, %s24
          %s165 = scalar_lea.hbm %s1, %s164
          %s167 = sshll.u32 %s165, 4
          %s168 = int_to_ptr.hbm [resolvable:$true] %s167
          %s169 = sshll.u32 %s161, 4
          %s170 = int_to_ptr.vmem [resolvable:$true] %s169
          %172 = dma.hbm_to_vmem [thread:$0]  %s168, 16, %s170, %s159
        $region24: #{tpu_custom_call.1} parent=15 // pred_fallthru
          _
      $region16: #{tpu_custom_call.1} parent=5 // pred_fallthru
        _
      %p173 = scmp.le.s32.totalorder 1, %s17
      %p174 = scmp.lt.s32.totalorder %s17, 3
      %p175 = pnand %p173, %p174
      %p176 = pneg %p175
      // Predicated region
      $region25: #{tpu_custom_call.1} parent=5 // pred_check
        _
      $region26: #{tpu_custom_call.1} parent=5 // pred_check_branch
        %178 = sbr.rel (%p175) target = $region28
      $region27: #{tpu_custom_call.1} parent=5 // pred_region
        %s179 = ssub.s32 %s17, 1
        %s180 = sand.u32 %s44, 1
        %s181 = scalar_lea.sflag [#allocation3], %s180
        %s182 = sand.u32 %s44, 1
        %s183 = smul.addr %s182, 8
        %s184 = scalar_lea.vmem [#allocation2], %s183
        // Predicated region
        $region29: #{tpu_custom_call.1} parent=27 // pred_check
          %p185 = pneg %p57
        $region30: #{tpu_custom_call.1} parent=27 // pred_check_branch
          %187 = sbr.rel (%p185) target = $region32
        $region31: #{tpu_custom_call.1} parent=27 // pred_region
          %189 = dma.done %s181, 128
        $region32: #{tpu_custom_call.1} parent=27 // pred_fallthru
          _
        %s190 = sand.u32 %s72, 1
        %s191 = scalar_lea.sflag [#allocation6], %s190
        %s192 = sand.u32 %s72, 1
        %s193 = scalar_lea.vmem [#allocation5], %s192
        // Predicated region
        $region33: #{tpu_custom_call.1} parent=27 // pred_check
          %p194 = pneg %p85
        $region34: #{tpu_custom_call.1} parent=27 // pred_check_branch
          %196 = sbr.rel (%p194) target = $region36
        $region35: #{tpu_custom_call.1} parent=27 // pred_region
          %198 = dma.done %s191, 16
        $region36: #{tpu_custom_call.1} parent=27 // pred_fallthru
          _
        %s199 = sand.u32 %s44, 1
        %s200 = scalar_lea.sflag [#allocation3], %s199
        %s201 = sand.u32 %s44, 1
        %s202 = smul.addr %s201, 8
        %s203 = scalar_lea.vmem [#allocation2], %s202
        %p204 = pneg %p57
        %p205 = pneg %p54
        %s206 = sand.u32 %s72, 1
        %s207 = scalar_lea.sflag [#allocation6], %s206
        %s208 = sand.u32 %s72, 1
        %s209 = scalar_lea.vmem [#allocation5], %s208
        %p210 = pneg %p85
        %p211 = pneg %p82
        %p212 = pneg %p113
        %p213 = pneg %p110
        %s214 = sand.u32 %s100, 1
        %s215 = scalar_lea.sflag [#allocation4], %s214
        %s216 = sand.u32 %s100, 1
        %s217 = scalar_lea.vmem [#allocation7], %s216
        %v218 = vld [vmem:[%s193] sm:$0x1]
        %v219 = vunpack.c.l.b16 %v218
        %vm220 = vcmp.ne.s32.totalorder %v219, 255
        %v221 = vld [vmem:[%s184] sm:$0x3]
        %s222 = scalar_lea.vmem %s184, 2 [#allocation2]
        %v223 = vld [vmem:[%s222] sm:$0x3]
        %v224 = vmax.f32 %v221, %v223
        %s225 = scalar_lea.vmem %s184, 4 [#allocation2]
        %v226 = vld [vmem:[%s225] sm:$0x3]
        %v227 = vmax.f32 %v224, %v226
        %s228 = scalar_lea.vmem %s184, 6 [#allocation2]
        %v229 = vld [vmem:[%s228] sm:$0x3]
        %v230 = vmax.f32 %v227, %v229
        %v231 = vsub.f32 %v221, %v230
        %v232 = vmul.f32 %v231, 1.442695
        %v233 = vpow.pop %v232
        %v234 = vadd.f32 %v233, 0.0
        %vm235 = vcmp.eq.s32.totalorder %v219, 0
        %v236 = vsel %vm235, %v221, 0.0
        %v237 = vsub.f32 %v223, %v230
        %v238 = vmul.f32 %v237, 1.442695
        %v239 = vpow.pop %v238
        %v240 = vadd.f32 %v234, %v239
        %vm241 = vcmp.eq.s32.totalorder %v219, 1
        %v242 = vsel %vm241, %v223, %v236
        %v243 = vsub.f32 %v226, %v230
        %v244 = vmul.f32 %v243, 1.442695
        %v245 = vpow.pop %v244
        %v246 = vadd.f32 %v240, %v245
        %vm247 = vcmp.eq.s32.totalorder %v219, 2
        %v248 = vsel %vm247, %v226, %v242
        %v249 = vsub.f32 %v229, %v230
        %v250 = vmul.f32 %v249, 1.442695
        %v251 = vpow.pop %v250
        %v252 = vadd.f32 %v246, %v251
        %vm253 = vcmp.eq.s32.totalorder %v219, 3
        %v254 = vsel %vm253, %v229, %v248
        %v255 = vlog2.pop %v252
        %v256 = vmul.f32 %v255, 0.6931472
        %v257 = vadd.f32 %v256, %v230
        %v258 = vsub.f32 %v257, %v254
        %v259 = vsel %vm220, %v258, 0.0
        %v260 = vsub.f32 0.0, %v259
        %v261 = vmul.f32 %v260, 1.442695
        %v262 = vpow.pop %v261
        %v263 = vsub.f32 1.0, %v262
        %v264 = vmax.f32 %v263, 0.0
        %v265 = vmul.f32 %v264, %v264
        %v266 = vmul.f32 %v265, %v259
        %vm267 = vcmask 1041408
        %v268 = vsel %vm267, %v266, 0.0
        %v269 = vrot.slane %v268, 4
        %v270 = vadd.f32 %v268, %v269
        %v271 = vrot.slane %v270, 2
        %v272 = vadd.f32 %v270, %v271
        %v273 = vrot.slane %v272, 1
        %v274 = vadd.f32 %v272, %v273
        %275 = vst [vmem:[%s217] sm:$0x1] %v274
        %s276 = sand.u32 %s100, 1
        %s277 = scalar_lea.sflag [#allocation4], %s276
        %s278 = sand.u32 %s100, 1
        %s279 = scalar_lea.vmem [#allocation7], %s278
        // Predicated region
        $region37: #{tpu_custom_call.1} parent=27 // pred_check
          %p280 = pneg %p110
        $region38: #{tpu_custom_call.1} parent=27 // pred_check_branch
          %282 = sbr.rel (%p280) target = $region40
        $region39: #{tpu_custom_call.1} parent=27 // pred_region
          %284 = vsyncadd %s277, 0
          %s285 = sadd.s32 %s27, %s26
          %s286 = scalar_lea.hbm %s2, %s285
          %s288 = sshll.u32 %s279, 4
          %s289 = int_to_ptr.vmem [resolvable:$true] %s288
          %s290 = sshll.u32 %s286, 4
          %s291 = int_to_ptr.hbm [resolvable:$true] %s290
          %293 = dma.vmem_to_hbm [thread:$0]  %s289, 16, %s291, %s277
        $region40: #{tpu_custom_call.1} parent=27 // pred_fallthru
          _
      $region28: #{tpu_custom_call.1} parent=5 // pred_fallthru
        _
      %p294 = scmp.le.s32.totalorder 2, %s17
      // Predicated region
      $region41: #{tpu_custom_call.1} parent=5 // pred_check
        %p295 = pneg %p294
      $region42: #{tpu_custom_call.1} parent=5 // pred_check_branch
        %297 = sbr.rel (%p295) target = $region44
      $region43: #{tpu_custom_call.1} parent=5 // pred_region
        %s298 = ssub.s32 %s17, 2
        // Predicated region
        $region45: #{tpu_custom_call.1} parent=43 // pred_check
          %p299 = pneg %p116
        $region46: #{tpu_custom_call.1} parent=43 // pred_check_branch
          %301 = sbr.rel (%p299) target = $region48
        $region47: #{tpu_custom_call.1} parent=43 // pred_region
          %s302 = sand.u32 %s101, 1
          %s303 = scalar_lea.sflag [#allocation4], %s302
          %s304 = sand.u32 %s101, 1
          %s305 = scalar_lea.vmem [#allocation7], %s304
          %307 = dma.done %s303, 16
        $region48: #{tpu_custom_call.1} parent=43 // pred_fallthru
          _
      $region44: #{tpu_custom_call.1} parent=5 // pred_fallthru
        _
    $region6: #{tpu_custom_call.1} parent=1 // loop_footer
      %s21 = sadd.s32 1, %s17
    $region7: #{tpu_custom_call.1} parent=1 // loop_footer_branch
      %16 = sbr.rel target = $region3
    $region8: #{tpu_custom_call.1} parent=1 // loop_exit
      _
    %308 = vsyncpa [#allocation3], 1
    %s309 = scalar_lea.sflag [#allocation3], 1
    %310 = vsyncpa %s309, 1
    %311 = vsyncpa [#allocation6], 1
    %s312 = scalar_lea.sflag [#allocation6], 1
    %313 = vsyncpa %s312, 1
    %314 = vsyncpa [#allocation4], 1
    %s315 = scalar_lea.sflag [#allocation4], 1
    %316 = vsyncpa %s315, 1

</llo_original>
